<compile_context>
chip_gen: v7x
topology: tpu7x:2x2x1
jax: 0.10.0
libtpu: 0.0.40
codegen_flags: <defaults>
</compile_context>

<pallas_src>
import jax
import jax.numpy as jnp
from jax import lax
from jax.experimental import pallas as pl
from jax.experimental.pallas import tpu as pltpu


def attention_kernel(qb_ref, v_ref, wv_ref, wx_ref, bx_ref, o_ref):
    # qb_ref: (Nb, M, 1)   fp32 per-batch q-path bias (q@wq + bq + bv)
    # v_ref : (Nb, Cv, T)  image features, channels on sublanes / HW on lanes
    # wv_ref: (M, Cv)      v_conv weight, transposed
    # wx_ref: (G, M)       x_conv weight, transposed
    # bx_ref: (G, 1)       fp32 x_conv bias
    # o_ref : (Nb, G, T)
    wv = wv_ref[...]          # weights hoisted out of the batch loop
    wx = wx_ref[...]
    bx = bx_ref[...]
    nb = v_ref.shape[0]

    def body(i, carry):
        v = v_ref[i]                                                   # [Cv, T]
        # 1x1 conv == matmul over channels (MXU, fp32 accumulate)
        v_mid = jnp.dot(wv, v, preferred_element_type=jnp.float32)     # [M, T]
        # tile_2d_over_nd: q bias broadcast over spatial lanes, then ReLU (VPU)
        x = jnp.maximum(v_mid + qb_ref[i], 0.0)                        # [M, T]
        # x_conv: 1x1 conv -> glimpses
        out = jnp.dot(wx, x.astype(wx.dtype),
                      preferred_element_type=jnp.float32) + bx         # [G, T]
        o_ref[i] = out.astype(o_ref.dtype)
        return carry

    lax.fori_loop(0, nb, body, 0, unroll=True)


def _round_up(x, m):
    return ((x + m - 1) // m) * m


def _vmem_bytes(nb, t, cv, m, g, elt_in, elt_out):
    """Conservative per-step VMEM estimate: double-buffered pipeline blocks
    (sublane-padded to 8, lanes padded to 128), resident weights, and fp32
    [M,T] intermediates of the unrolled batch loop, plus 2 MiB slack."""
    v_blk = 2 * nb * _round_up(cv, 8) * t * elt_in
    o_blk = 2 * nb * _round_up(g, 8) * t * elt_out
    qb_blk = 2 * nb * _round_up(m, 8) * 128 * 4
    w_blk = 2 * (_round_up(m, 8) * _round_up(cv, 128) * elt_in
                 + _round_up(g, 8) * _round_up(m, 128) * elt_in
                 + _round_up(g, 8) * 128 * 4)
    interm = 3 * _round_up(m, 8) * t * 4 + _round_up(g, 8) * t * 4
    return v_blk + o_blk + qb_blk + w_blk + interm + (2 << 20)


def _pick_tiling(n, hw_pad, cv, m, g, elt_in, elt_out, budget):
    """Pick (Nb, T_hw): as many batch rows per grid step as possible (<=8) and
    the largest 128-multiple HW tile dividing hw_pad that fits the budget."""
    k = hw_pad // 128
    nb = max(1, min(n, 8))
    while True:
        for d in range(k, 0, -1):
            if k % d == 0 and _vmem_bytes(nb, d * 128, cv, m, g,
                                          elt_in, elt_out) <= budget:
                return nb, d * 128
        if nb == 1:
            return 1, 128          # over budget even at the minimum; let it ride
        nb = max(1, nb // 2)


def attention_forward(v_nchw, q, params, compute_dtype=None, out_dtype=None):
    """v_nchw: [N, Cv, H, W], q: [N, Cq]. Returns [N, G, H, W] (eval mode)."""
    wv, bv, wq, bq, wx, bx = (params[k] for k in
                              ("wv", "bv", "wq", "bq", "wx", "bx"))
    N, Cv, H, W = v_nchw.shape
    M = wv.shape[1]
    G = wx.shape[1]
    HW = H * W
    if compute_dtype is None:
        compute_dtype = jnp.bfloat16   # HBM-bound kernel: halve read traffic
    if out_dtype is None:
        out_dtype = v_nchw.dtype       # pass jnp.bfloat16 to also halve writes
    elt_in = jnp.dtype(compute_dtype).itemsize
    elt_out = jnp.dtype(out_dtype).itemsize

    # ---- generation-aware VMEM budget (~48 MiB v7x, ~96 MiB v5e/v6e) --------
    try:
        vmem_cap = int(pltpu.get_tpu_info().vmem_capacity_bytes)
    except Exception:
        vmem_cap = 64 << 20            # conservative fallback (v7x-sized)
    budget = (vmem_cap * 3) // 4

    # ---- wrapper-side prep (cheap / weight-sized ops; q path hoisted) -------
    HW_pad = _round_up(HW, 128)        # lane-align spatial axis (no odd tails)
    v_flat = v_nchw.reshape(N, Cv, HW)  # pure reshape, no HBM transpose
    if HW_pad != HW:
        v_flat = jnp.pad(v_flat, ((0, 0), (0, 0), (0, HW_pad - HW)))
    v_flat = v_flat.astype(compute_dtype)
    # Hoisted q path: Linear(q) + its bias + folded v_conv bias.  [N, M, 1] fp32
    q_bias = (q.astype(jnp.float32) @ wq.astype(jnp.float32)
              + bq + bv).reshape(N, M, 1).astype(jnp.float32)
    wv_t = jnp.transpose(wv).astype(compute_dtype)   # [M, Cv]
    wx_t = jnp.transpose(wx).astype(compute_dtype)   # [G, M]
    bx2 = bx.reshape(G, 1).astype(jnp.float32)

    # ---- tiling / grid -------------------------------------------------------
    Nb, T_hw = _pick_tiling(N, HW_pad, Cv, M, G, elt_in, elt_out, budget)
    n_tiles = pl.cdiv(N, Nb)
    Nb = pl.cdiv(N, n_tiles)           # rebalance to minimize batch padding
    hw_tiles = HW_pad // T_hw

    # Guarantee >= 2 parallel grid points so v7x's second TensorCore gets work.
    if n_tiles * hw_tiles < 2:
        k = HW_pad // 128
        if k >= 2:                     # split the spatial axis
            d = k - 1
            while k % d:
                d -= 1
            T_hw = d * 128
            hw_tiles = HW_pad // T_hw
        elif N >= 2:                   # single 128-lane tile: split the batch
            n_tiles = 2
            Nb = pl.cdiv(N, 2)

    N_pad = Nb * n_tiles
    if N_pad != N:
        v_flat = jnp.pad(v_flat, ((0, N_pad - N), (0, 0), (0, 0)))
        q_bias = jnp.pad(q_bias, ((0, N_pad - N), (0, 0), (0, 0)))

    grid = (n_tiles, hw_tiles)

    flops = N_pad * HW_pad * (2 * Cv * M + 2 * M * G)
    bytes_accessed = (N_pad * Cv * HW_pad * elt_in        # v read
                      + N_pad * G * HW_pad * elt_out      # out write
                      + N_pad * M * 4                     # q_bias read
                      + (M * Cv + G * M) * elt_in + (M + G) * 4)

    out_flat = pl.pallas_call(
        attention_kernel,
        out_shape=jax.ShapeDtypeStruct((N_pad, G, HW_pad), out_dtype),
        grid_spec=pltpu.PrefetchScalarGridSpec(
            num_scalar_prefetch=0,
            grid=grid,
            in_specs=[
                pl.BlockSpec((Nb, M, 1), lambda b, t: (b, 0, 0)),      # q_bias
                pl.BlockSpec((Nb, Cv, T_hw), lambda b, t: (b, 0, t)),  # v
                pl.BlockSpec((M, Cv), lambda b, t: (0, 0)),            # wv^T
                pl.BlockSpec((G, M), lambda b, t: (0, 0)),             # wx^T
                pl.BlockSpec((G, 1), lambda b, t: (0, 0)),             # bx
            ],
            out_specs=pl.BlockSpec((Nb, G, T_hw), lambda b, t: (b, 0, t)),
        ),
        compiler_params=pltpu.CompilerParams(
            dimension_semantics=("parallel", "parallel"),
            vmem_limit_bytes=int(budget)),
        cost_estimate=pl.CostEstimate(
            flops=int(flops), transcendentals=0,
            bytes_accessed=int(bytes_accessed)),
    )(q_bias, v_flat, wv_t, wx_t, bx2)

    # Slice off batch/spatial padding; pure reshape back to NCHW.
    return out_flat[:N, :, :HW].reshape(N, G, H, W)


def init_params(key, v_features, q_features, mid_features, glimpses):
    k = jax.random.split(key, 6)
    # Conv2d(v_features, mid, 1): weight [mid, v_features, 1, 1] -> stored [v_features, mid]
    wv = jax.random.normal(k[0], (v_features, mid_features), jnp.float32) * 0.1
    bv = jax.random.normal(k[1], (mid_features,), jnp.float32) * 0.1
    # Linear(q_features, mid): weight [mid, q_features] -> stored [q_features, mid]
    wq = jax.random.normal(k[2], (q_features, mid_features), jnp.float32) * 0.1
    bq = jax.random.normal(k[3], (mid_features,), jnp.float32) * 0.1
    # Conv2d(mid, glimpses, 1): weight [glimpses, mid, 1, 1] -> stored [mid, glimpses]
    wx = jax.random.normal(k[4], (mid_features, glimpses), jnp.float32) * 0.1
    bx = jax.random.normal(k[5], (glimpses,), jnp.float32) * 0.1
    return dict(wv=wv, bv=bv, wq=wq, bq=bq, wx=wx, bx=bx)


def attention_reference(v_nchw, q, p):
    """Pure-JAX reference mirroring the PyTorch Attention module (eval mode)."""
    v = jnp.einsum("nchw,cm->nmhw", v_nchw, p["wv"]) + p["bv"][None, :, None, None]
    qm = q @ p["wq"] + p["bq"]                                  # [N, M]
    x = jax.nn.relu(v + qm[:, :, None, None])
    out = jnp.einsum("nmhw,mg->nghw", x, p["wx"]) + p["bx"][None, :, None, None]
    return out


if __name__ == "__main__":
    # small shapes: N=2, v_features=4, H=W=16, q_features=32, mid=32, glimpses=2
    N, Cv, H, W = 2, 4, 16, 16
    Cq, M, G = 32, 32, 2

    key = jax.random.PRNGKey(0)
    kv, kq, kp = jax.random.split(key, 3)
    v = jax.random.normal(kv, (N, Cv, H, W), jnp.float32)
    q = jax.random.normal(kq, (N, Cq), jnp.float32)
    params = init_params(kp, Cv, Cq, M, G)

    ref = attention_reference(v, q, params)

    # Exact-precision path (fp32 compute) -> tight tolerance.
    out_fp32 = jax.block_until_ready(
        attention_forward(v, q, params, compute_dtype=jnp.float32))
    assert out_fp32.shape == (N, G, H, W), out_fp32.shape
    assert jnp.allclose(out_fp32, ref, atol=1e-4, rtol=1e-4), \
        float(jnp.max(jnp.abs(out_fp32 - ref)))

    # Default path (bf16 inputs/weights, fp32 accumulation) -> bf16-level tolerance.
    out_def = jax.block_until_ready(attention_forward(v, q, params))
    assert out_def.shape == (N, G, H, W), out_def.shape
    assert jnp.allclose(out_def.astype(jnp.float32), ref, atol=5e-2, rtol=5e-2), \
        float(jnp.max(jnp.abs(out_def.astype(jnp.float32) - ref)))

    print("KERNEL_OK")
</pallas_src>

<mosaic_0001>
module attributes {stable_mosaic.version = 11 : i64} {
  func.func @attention_kernel(%arg0: i32, %arg1: i32, %arg2: memref<2x32x1xf32, #tpu.memory_space<vmem>>, %arg3: memref<2x4x128xf32, #tpu.memory_space<vmem>>, %arg4: memref<32x4xf32, #tpu.memory_space<vmem>>, %arg5: memref<2x32xf32, #tpu.memory_space<vmem>>, %arg6: memref<2x1xf32, #tpu.memory_space<vmem>>, %arg7: memref<2x2x128xf32, #tpu.memory_space<vmem>>) attributes {dimension_semantics = [#tpu.dimension_semantics<parallel>, #tpu.dimension_semantics<parallel>], iteration_bounds = array<i64: 1, 2>, scalar_prefetch = 0 : i64, scratch_operands = 0 : i64, tpu.core_type = #tpu.core_type<tc>, window_params = [{transform_indices = @transform_0, window_bounds = array<i64: 2, 32, 1>}, {transform_indices = @transform_1, window_bounds = array<i64: 2, 4, 128>}, {pipeline_mode = #tpu.pipeline_mode<synchronous>, transform_indices = @transform_2, window_bounds = array<i64: 32, 4>}, {pipeline_mode = #tpu.pipeline_mode<synchronous>, transform_indices = @transform_3, window_bounds = array<i64: 2, 32>}, {pipeline_mode = #tpu.pipeline_mode<synchronous>, transform_indices = @transform_4, window_bounds = array<i64: 2, 1>}, {transform_indices = @transform_5, window_bounds = array<i64: 2, 2, 128>}]} {
    %c0 = arith.constant 0 : index
    %c0_0 = arith.constant 0 : index
    %0 = vector.load %arg4[%c0, %c0_0] : memref<32x4xf32, #tpu.memory_space<vmem>>, vector<32x4xf32>
    %c0_1 = arith.constant 0 : index
    %c0_2 = arith.constant 0 : index
    %1 = vector.load %arg5[%c0_1, %c0_2] : memref<2x32xf32, #tpu.memory_space<vmem>>, vector<2x32xf32>
    %c0_3 = arith.constant 0 : index
    %c0_4 = arith.constant 0 : index
    %2 = vector.load %arg6[%c0_3, %c0_4] : memref<2x1xf32, #tpu.memory_space<vmem>>, vector<2x1xf32>
    %c0_i32 = arith.constant 0 : i32
    %3 = arith.index_cast %c0_i32 : i32 to index
    %c0_5 = arith.constant 0 : index
    %c0_6 = arith.constant 0 : index
    %4 = vector.load %arg3[%3, %c0_5, %c0_6] : memref<2x4x128xf32, #tpu.memory_space<vmem>>, vector<1x4x128xf32>
    %5 = vector.shape_cast %4 : vector<1x4x128xf32> to vector<4x128xf32>
    %cst = arith.constant dense<0.000000e+00> : vector<32x128xf32>
    %6 = tpu.matmul %0, %5, %cst {dimension_numbers = #tpu.dot_dimension_numbers<[1], [0], [0], [1], [0, 0, 1, 1], [], []>} : vector<32x4xf32>, vector<4x128xf32>, vector<32x128xf32> -> vector<32x128xf32>
    %7 = arith.index_cast %c0_i32 : i32 to index
    %c0_7 = arith.constant 0 : index
    %c0_8 = arith.constant 0 : index
    %8 = vector.load %arg2[%7, %c0_7, %c0_8] : memref<2x32x1xf32, #tpu.memory_space<vmem>>, vector<1x32x1xf32>
    %9 = vector.shape_cast %8 : vector<1x32x1xf32> to vector<32x1xf32>
    %10 = vector.broadcast %9 : vector<32x1xf32> to vector<32x128xf32>
    %11 = arith.addf %6, %10 : vector<32x128xf32>
    %cst_9 = arith.constant 0.000000e+00 : f32
    %12 = vector.broadcast %cst_9 : f32 to vector<32x128xf32>
    %13 = arith.maximumf %11, %12 : vector<32x128xf32>
    %cst_10 = arith.constant dense<0.000000e+00> : vector<2x128xf32>
    %14 = tpu.matmul %1, %13, %cst_10 {dimension_numbers = #tpu.dot_dimension_numbers<[1], [0], [0], [1], [0, 0, 1, 1], [], []>} : vector<2x32xf32>, vector<32x128xf32>, vector<2x128xf32> -> vector<2x128xf32>
    %15 = vector.broadcast %2 : vector<2x1xf32> to vector<2x128xf32>
    %16 = arith.addf %14, %15 : vector<2x128xf32>
    %17 = arith.index_cast %c0_i32 : i32 to index
    %c0_11 = arith.constant 0 : index
    %c0_12 = arith.constant 0 : index
    %18 = vector.load %arg7[%17, %c0_11, %c0_12] : memref<2x2x128xf32, #tpu.memory_space<vmem>>, vector<1x2x128xf32>
    %19 = vector.shape_cast %18 : vector<1x2x128xf32> to vector<2x128xf32>
    %20 = vector.shape_cast %16 : vector<2x128xf32> to vector<1x2x128xf32>
    tpu.vector_store %arg7[%17, %c0_11, %c0_12], %20 {strides = array<i32>} : memref<2x2x128xf32, #tpu.memory_space<vmem>>, vector<1x2x128xf32>,
    %c1_i32 = arith.constant 1 : i32
    %21 = arith.index_cast %c1_i32 : i32 to index
    %c0_13 = arith.constant 0 : index
    %c0_14 = arith.constant 0 : index
    %22 = vector.load %arg3[%21, %c0_13, %c0_14] : memref<2x4x128xf32, #tpu.memory_space<vmem>>, vector<1x4x128xf32>
    %23 = vector.shape_cast %22 : vector<1x4x128xf32> to vector<4x128xf32>
    %cst_15 = arith.constant dense<0.000000e+00> : vector<32x128xf32>
    %24 = tpu.matmul %0, %23, %cst_15 {dimension_numbers = #tpu.dot_dimension_numbers<[1], [0], [0], [1], [0, 0, 1, 1], [], []>} : vector<32x4xf32>, vector<4x128xf32>, vector<32x128xf32> -> vector<32x128xf32>
    %25 = arith.index_cast %c1_i32 : i32 to index
    %c0_16 = arith.constant 0 : index
    %c0_17 = arith.constant 0 : index
    %26 = vector.load %arg2[%25, %c0_16, %c0_17] : memref<2x32x1xf32, #tpu.memory_space<vmem>>, vector<1x32x1xf32>
    %27 = vector.shape_cast %26 : vector<1x32x1xf32> to vector<32x1xf32>
    %28 = vector.broadcast %27 : vector<32x1xf32> to vector<32x128xf32>
    %29 = arith.addf %24, %28 : vector<32x128xf32>
    %cst_18 = arith.constant 0.000000e+00 : f32
    %30 = vector.broadcast %cst_18 : f32 to vector<32x128xf32>
    %31 = arith.maximumf %29, %30 : vector<32x128xf32>
    %cst_19 = arith.constant dense<0.000000e+00> : vector<2x128xf32>
    %32 = tpu.matmul %1, %31, %cst_19 {dimension_numbers = #tpu.dot_dimension_numbers<[1], [0], [0], [1], [0, 0, 1, 1], [], []>} : vector<2x32xf32>, vector<32x128xf32>, vector<2x128xf32> -> vector<2x128xf32>
    %33 = vector.broadcast %2 : vector<2x1xf32> to vector<2x128xf32>
    %34 = arith.addf %32, %33 : vector<2x128xf32>
    %35 = arith.index_cast %c1_i32 : i32 to index
    %c0_20 = arith.constant 0 : index
    %c0_21 = arith.constant 0 : index
    %36 = vector.load %arg7[%35, %c0_20, %c0_21] : memref<2x2x128xf32, #tpu.memory_space<vmem>>, vector<1x2x128xf32>
    %37 = vector.shape_cast %36 : vector<1x2x128xf32> to vector<2x128xf32>
    %38 = vector.shape_cast %34 : vector<2x128xf32> to vector<1x2x128xf32>
    tpu.vector_store %arg7[%35, %c0_20, %c0_21], %38 {strides = array<i32>} : memref<2x2x128xf32, #tpu.memory_space<vmem>>, vector<1x2x128xf32>,
    %c2_i32 = arith.constant 2 : i32
    return
  }
  func.func @transform_0(%arg0: i32, %arg1: i32) -> (i32, i32, i32) {
    %c0_i32 = arith.constant 0 : i32
    %c0_i32_0 = arith.constant 0 : i32
    %c0_i32_1 = arith.constant 0 : i32
    return %arg0, %c0_i32, %c0_i32_0 : i32, i32, i32
  }
  func.func @transform_1(%arg0: i32, %arg1: i32) -> (i32, i32, i32) {
    %c0_i32 = arith.constant 0 : i32
    %c0_i32_0 = arith.constant 0 : i32
    return %arg0, %c0_i32, %arg1 : i32, i32, i32
  }
  func.func @transform_2(%arg0: i32, %arg1: i32) -> (i32, i32) {
    %c0_i32 = arith.constant 0 : i32
    %c0_i32_0 = arith.constant 0 : i32
    %c0_i32_1 = arith.constant 0 : i32
    return %c0_i32, %c0_i32_0 : i32, i32
  }
  func.func @transform_3(%arg0: i32, %arg1: i32) -> (i32, i32) {
    %c0_i32 = arith.constant 0 : i32
    %c0_i32_0 = arith.constant 0 : i32
    %c0_i32_1 = arith.constant 0 : i32
    return %c0_i32, %c0_i32_0 : i32, i32
  }
  func.func @transform_4(%arg0: i32, %arg1: i32) -> (i32, i32) {
    %c0_i32 = arith.constant 0 : i32
    %c0_i32_0 = arith.constant 0 : i32
    %c0_i32_1 = arith.constant 0 : i32
    return %c0_i32, %c0_i32_0 : i32, i32
  }
  func.func @transform_5(%arg0: i32, %arg1: i32) -> (i32, i32, i32) {
    %c0_i32 = arith.constant 0 : i32
    %c0_i32_0 = arith.constant 0 : i32
    return %arg0, %c0_i32, %arg1 : i32, i32, i32
  }
}

</mosaic_0001>

<llo_original>
// kernel: tpu_custom_call.1
$region0: #{tpu_custom_call.1}
  #allocation0 [shape = 'u32[]', space=smem, size = 0x4, offset = 0x4, fixed_abs, tag = 'smem constant byte address 0x4 - core index']
  #allocation1 [shape = 'u32[144,128]{1,0:T(1,128)}', space=vmem, size = 0x12000, scoped, tag = 'internal scratch']
  %s0 = inlined_call_operand.vmem [shape: f32[2,32,1], index: 0, kind: input, shape index: {}]
  %s1 = inlined_call_operand.vmem [shape: f32[2,4,256], index: 1, kind: input, shape index: {}]
  %s2 = inlined_call_operand.vmem [shape: f32[32,4], index: 2, kind: input, shape index: {}]
  %s3 = inlined_call_operand.vmem [shape: f32[2,32], index: 3, kind: input, shape index: {}]
  %s4 = inlined_call_operand.vmem [shape: f32[2,1], index: 4, kind: input, shape index: {}]
  %s5 = inlined_call_operand.hbm [shape: f32[2,2,256], index: 5, kind: output, shape index: {}]
  %s6 = sld [smem:[#allocation0]]
  $region94: #{tpu_custom_call.1} parent=0
    _
  %s8 = ssub.s32 1, %s6
  %s9 = scalar_select 0, %s8, %s6
  $region1: #{tpu_custom_call.1} parent=0
    #allocation2 [shape = 'u8[8192]{0}', space=vmem, size = 0x2000, scoped, tag = 'input window, operand 1']
    #allocation3 [shape = 'u8[4096]{0}', space=vmem, size = 0x1000, scoped, tag = 'output window, operand 0']
    #allocation4 [shape = 's32[2]{0}', space=sflag, size = 0x8, scoped, tag = 'scoped memory for tpu_custom_call.1']
    %10 = vsyncpa [#allocation4], 0
    %s11 = scalar_lea.sflag [#allocation4], 1
    %12 = vsyncpa %s11, 0
    loop: start=0, step=1, limit=4
    $region2: #{tpu_custom_call.1} parent=1 // loop_pre_header
      _
    $region3: #{tpu_custom_call.1} parent=1 // loop_header
      %s14 = sphi 0, %s18
      %p15 = scmp.ge.s32.totalorder %s14, 4
      %s21 = sphi 0, %s33
      %s22 = sphi 0, %s29
      %s23 = sphi 0, %s21
      %s24 = sphi 0, %s22
      %s25 = sphi 0, %s23
      %s26 = sphi 0, %s24
      %s36 = sphi 0, %s38
      %s39 = sphi 0, %s36
      %s40 = sphi 0, %s39
      %s56 = sphi 0, %s40
      %s64 = sphi 0, %s66
      %s67 = sphi 0, %s64
      %s68 = sphi 0, %s67
      %s84 = sphi 0, %s68
      %s88 = sphi 0, %s88
      %s90 = sphi 0, %s88
      %s91 = sphi 0, %s90
      %s105 = sphi 0, %s91
      %s109 = sphi 0, %s109
      %s111 = sphi 0, %s109
      %s112 = sphi 0, %s111
      %s126 = sphi 0, %s112
      %s130 = sphi 0, %s130
      %s132 = sphi 0, %s130
      %s133 = sphi 0, %s132
      %s147 = sphi 0, %s133
      %s155 = sphi 0, %s157
      %s158 = sphi 0, %s155
      %s159 = sphi 0, %s158
      %s175 = sphi 0, %s159
    $region4: #{tpu_custom_call.1} parent=1 // loop_header_branch
      %17 = sbr.rel (%p15) target = $region8
    $region5: #{tpu_custom_call.1} parent=1 // loop_body
      %s19 = ssub.s32 %s14, 1
      %s20 = ssub.s32 %s14, 2
      %s27 = sadd.s32 1, %s22
      %p28 = scmp.ge.s32.totalorder %s27, 2
      %s29 = scalar_select %p28, 0, %s27
      %s30 = sadd.s32 1, %s21
      %s31 = scalar_select %p28, %s30, %s21
      %p32 = scmp.ge.s32.totalorder %s31, 1
      %s33 = scalar_select %p32, 0, %s31
      %s34 = ssub.s32 %s21, %s33
      %p35 = scmp.eq.s32.totalorder %s34, 0
      %s37 = sadd.s32 %s36, 1
      %s38 = scalar_select %p35, %s36, %s37
      %p41 = pneg %p35
      %p42 = scmp.eq.s32.totalorder %s14, 1
      %p43 = por %p41, %p42
      %p44 = scmp.ne.s32.totalorder %s36, %s39
      %p45 = scmp.eq.s32.totalorder %s14, 0
      %p46 = por %p44, %p45
      %p47 = scmp.ne.s32.totalorder %s36, %s39
      %p48 = scmp.eq.s32.totalorder %s19, 1
      %p49 = por %p47, %p48
      %p50 = scmp.ne.s32.totalorder %s39, %s40
      %p51 = scmp.eq.s32.totalorder %s19, 0
      %p52 = por %p50, %p51
      %p53 = scmp.ne.s32.totalorder %s39, %s40
      %p54 = scmp.eq.s32.totalorder %s20, 1
      %p55 = por %p53, %p54
      %p57 = scmp.ne.s32.totalorder %s40, %s56
      %p58 = scmp.eq.s32.totalorder %s20, 0
      %p59 = por %p57, %p58
      %s60 = ssub.s32 %s21, %s33
      %s61 = ssub.s32 %s22, %s29
      %s62 = sor.u32 %s60, %s61
      %p63 = scmp.eq.s32.totalorder %s62, 0
      %s65 = sadd.s32 %s64, 1
      %s66 = scalar_select %p63, %s64, %s65
      %p69 = pneg %p63
      %p70 = scmp.eq.s32.totalorder %s14, 1
      %p71 = por %p69, %p70
      %p72 = scmp.ne.s32.totalorder %s64, %s67
      %p73 = scmp.eq.s32.totalorder %s14, 0
      %p74 = por %p72, %p73
      %p75 = scmp.ne.s32.totalorder %s64, %s67
      %p76 = scmp.eq.s32.totalorder %s19, 1
      %p77 = por %p75, %p76
      %p78 = scmp.ne.s32.totalorder %s67, %s68
      %p79 = scmp.eq.s32.totalorder %s19, 0
      %p80 = por %p78, %p79
      %p81 = scmp.ne.s32.totalorder %s67, %s68
      %p82 = scmp.eq.s32.totalorder %s20, 1
      %p83 = por %p81, %p82
      %p85 = scmp.ne.s32.totalorder %s68, %s84
      %p86 = scmp.eq.s32.totalorder %s20, 0
      %p87 = por %p85, %p86
      %s89 = sadd.s32 %s88, 1
      %p92 = scmp.eq.s32.totalorder %s14, 1
      %p93 = scmp.ne.s32.totalorder %s88, %s90
      %p94 = scmp.eq.s32.totalorder %s14, 0
      %p95 = por %p93, %p94
      %p96 = scmp.ne.s32.totalorder %s88, %s90
      %p97 = scmp.eq.s32.totalorder %s19, 1
      %p98 = por %p96, %p97
      %p99 = scmp.ne.s32.totalorder %s90, %s91
      %p100 = scmp.eq.s32.totalorder %s19, 0
      %p101 = por %p99, %p100
      %p102 = scmp.ne.s32.totalorder %s90, %s91
      %p103 = scmp.eq.s32.totalorder %s20, 1
      %p104 = por %p102, %p103
      %p106 = scmp.ne.s32.totalorder %s91, %s105
      %p107 = scmp.eq.s32.totalorder %s20, 0
      %p108 = por %p106, %p107
      %s110 = sadd.s32 %s109, 1
      %p113 = scmp.eq.s32.totalorder %s14, 1
      %p114 = scmp.ne.s32.totalorder %s109, %s111
      %p115 = scmp.eq.s32.totalorder %s14, 0
      %p116 = por %p114, %p115
      %p117 = scmp.ne.s32.totalorder %s109, %s111
      %p118 = scmp.eq.s32.totalorder %s19, 1
      %p119 = por %p117, %p118
      %p120 = scmp.ne.s32.totalorder %s111, %s112
      %p121 = scmp.eq.s32.totalorder %s19, 0
      %p122 = por %p120, %p121
      %p123 = scmp.ne.s32.totalorder %s111, %s112
      %p124 = scmp.eq.s32.totalorder %s20, 1
      %p125 = por %p123, %p124
      %p127 = scmp.ne.s32.totalorder %s112, %s126
      %p128 = scmp.eq.s32.totalorder %s20, 0
      %p129 = por %p127, %p128
      %s131 = sadd.s32 %s130, 1
      %p134 = scmp.eq.s32.totalorder %s14, 1
      %p135 = scmp.ne.s32.totalorder %s130, %s132
      %p136 = scmp.eq.s32.totalorder %s14, 0
      %p137 = por %p135, %p136
      %p138 = scmp.ne.s32.totalorder %s130, %s132
      %p139 = scmp.eq.s32.totalorder %s19, 1
      %p140 = por %p138, %p139
      %p141 = scmp.ne.s32.totalorder %s132, %s133
      %p142 = scmp.eq.s32.totalorder %s19, 0
      %p143 = por %p141, %p142
      %p144 = scmp.ne.s32.totalorder %s132, %s133
      %p145 = scmp.eq.s32.totalorder %s20, 1
      %p146 = por %p144, %p145
      %p148 = scmp.ne.s32.totalorder %s133, %s147
      %p149 = scmp.eq.s32.totalorder %s20, 0
      %p150 = por %p148, %p149
      %s151 = ssub.s32 %s21, %s33
      %s152 = ssub.s32 %s22, %s29
      %s153 = sor.u32 %s151, %s152
      %p154 = scmp.eq.s32.totalorder %s153, 0
      %s156 = sadd.s32 %s155, 1
      %s157 = scalar_select %p154, %s155, %s156
      %p160 = pneg %p154
      %p161 = scmp.eq.s32.totalorder %s14, 1
      %p162 = por %p160, %p161
      %p163 = scmp.ne.s32.totalorder %s155, %s158
      %p164 = scmp.eq.s32.totalorder %s14, 0
      %p165 = por %p163, %p164
      %p166 = scmp.ne.s32.totalorder %s155, %s158
      %p167 = scmp.eq.s32.totalorder %s19, 1
      %p168 = por %p166, %p167
      %p169 = scmp.ne.s32.totalorder %s158, %s159
      %p170 = scmp.eq.s32.totalorder %s19, 0
      %p171 = por %p169, %p170
      %p172 = scmp.ne.s32.totalorder %s158, %s159
      %p173 = scmp.eq.s32.totalorder %s20, 1
      %p174 = por %p172, %p173
      %p176 = scmp.ne.s32.totalorder %s159, %s175
      %p177 = scmp.eq.s32.totalorder %s20, 0
      %p178 = por %p176, %p177
      %p179 = scmp.le.s32.totalorder 1, %s14
      %p180 = scmp.lt.s32.totalorder %s14, 3
      %p181 = pnand %p179, %p180
      %p182 = pneg %p181
      // Predicated region
      $region9: #{tpu_custom_call.1} parent=5 // pred_check
        _
      $region10: #{tpu_custom_call.1} parent=5 // pred_check_branch
        %184 = sbr.rel (%p181) target = $region12
      $region11: #{tpu_custom_call.1} parent=5 // pred_region
        %s185 = ssub.s32 %s14, 1
        // Predicated region
        $region13: #{tpu_custom_call.1} parent=11 // pred_check
          %p186 = pneg %p52
        $region14: #{tpu_custom_call.1} parent=11 // pred_check_branch
          %188 = sbr.rel (%p186) target = $region16
        $region15: #{tpu_custom_call.1} parent=11 // pred_region
          %s189 = smul.u32 2, %s23
          %p190 = scmp.lt.s32.totalorder %s189, 1
          %s191 = scalar_select %p190, %s189, 1
          %s192 = smul.addr %s191, 4
          %s193 = smul.addr %s192, 8
          %s194 = scalar_lea.vmem %s0, %s193
          %s195 = smul.u32 2, %s23
        $region16: #{tpu_custom_call.1} parent=11 // pred_fallthru
          _
        // Predicated region
        $region17: #{tpu_custom_call.1} parent=11 // pred_check
          %p196 = pneg %p101
        $region18: #{tpu_custom_call.1} parent=11 // pred_check_branch
          %198 = sbr.rel (%p196) target = $region20
        $region19: #{tpu_custom_call.1} parent=11 // pred_region
          _
        $region20: #{tpu_custom_call.1} parent=11 // pred_fallthru
          _
        // Predicated region
        $region21: #{tpu_custom_call.1} parent=11 // pred_check
          %p199 = pneg %p122
        $region22: #{tpu_custom_call.1} parent=11 // pred_check_branch
          %201 = sbr.rel (%p199) target = $region24
        $region23: #{tpu_custom_call.1} parent=11 // pred_region
          _
        $region24: #{tpu_custom_call.1} parent=11 // pred_fallthru
          _
        // Predicated region
        $region25: #{tpu_custom_call.1} parent=11 // pred_check
          %p202 = pneg %p143
        $region26: #{tpu_custom_call.1} parent=11 // pred_check_branch
          %204 = sbr.rel (%p202) target = $region28
        $region27: #{tpu_custom_call.1} parent=11 // pred_region
          _
        $region28: #{tpu_custom_call.1} parent=11 // pred_fallthru
          _
      $region12: #{tpu_custom_call.1} parent=5 // pred_fallthru
        _
      %p205 = scmp.lt.s32.totalorder %s14, 2
      // Predicated region
      $region29: #{tpu_custom_call.1} parent=5 // pred_check
        %p206 = pneg %p205
      $region30: #{tpu_custom_call.1} parent=5 // pred_check_branch
        %208 = sbr.rel (%p206) target = $region32
      $region31: #{tpu_custom_call.1} parent=5 // pred_region
        // Predicated region
        $region33: #{tpu_custom_call.1} parent=31 // pred_check
          %p209 = pneg %p74
        $region34: #{tpu_custom_call.1} parent=31 // pred_check_branch
          %211 = sbr.rel (%p209) target = $region36
        $region35: #{tpu_custom_call.1} parent=31 // pred_region
          %s212 = sand.u32 %s64, 1
          %s213 = sand.u32 %s64, 1
          %s214 = smul.addr %s213, 8
          %s215 = scalar_lea.vmem [#allocation2], %s214
          %s216 = smul.u32 2, %s21
          %s217 = smul.addr %s216, 2
          %s218 = sadd.s32 %s22, %s217
          %s219 = smul.addr %s218, 4
          %s220 = scalar_lea.vmem %s1, %s219
          // Predicated region
          $region37: #{tpu_custom_call.1} parent=35 // pred_check
            _
          $region38: #{tpu_custom_call.1} parent=35 // pred_check_branch
            %222 = sbr.rel (0) target = $region40
          $region39: #{tpu_custom_call.1} parent=35 // pred_region
            // Predicated region
            $region41: #{tpu_custom_call.1} parent=39 // pred_check
              _
            $region42: #{tpu_custom_call.1} parent=39 // pred_check_branch
              %224 = sbr.rel target = $region44
            $region43: #{tpu_custom_call.1} parent=39 // pred_region
              // Predicated region
              $region56: #{tpu_custom_call.1} parent=43 // pred_check
                _
              $region57: #{tpu_custom_call.1} parent=43 // pred_check_branch
                %241 = sbr.rel (0) target = $region59
              $region58: #{tpu_custom_call.1} parent=43 // pred_region
                loop: start=0, step=1, limit=1
                $region60: #{tpu_custom_call.1} parent=58 // loop_pre_header
                  _
                $region61: #{tpu_custom_call.1} parent=58 // loop_header
                  %s243 = sphi 0, %s247
                  %p244 = scmp.ge.s32.totalorder %s243, 1
                  %s248 = sphi %s220, %s220
                  %s249 = sphi %s215, %s215
                $region62: #{tpu_custom_call.1} parent=58 // loop_header_branch
                  %246 = sbr.rel (%p244) target = $region66
                $region63: #{tpu_custom_call.1} parent=58 // loop_body
                  _
                $region64: #{tpu_custom_call.1} parent=58 // loop_footer
                  %s247 = sadd.s32 1, %s243
                $region65: #{tpu_custom_call.1} parent=58 // loop_footer_branch
                  %242 = sbr.rel target = $region61
                $region66: #{tpu_custom_call.1} parent=58 // loop_exit
                  _
                loop: start=0, step=1, limit=1
                $region67: #{tpu_custom_call.1} parent=58 // loop_pre_header
                  _
                $region68: #{tpu_custom_call.1} parent=58 // loop_header
                  %s252 = sphi 0, %s256
                  %p253 = scmp.ge.s32.totalorder %s252, 1
                  %s257 = sphi %s220, %s220
                  %s258 = sphi %s215, %s215
                $region69: #{tpu_custom_call.1} parent=58 // loop_header_branch
                  %255 = sbr.rel (%p253) target = $region73
                $region70: #{tpu_custom_call.1} parent=58 // loop_body
                  %v259 = vld [vmem:[%s257] sm:$0xf]
                  %260 = vst [vmem:[%s258] sm:$0xf] %v259
                  %v261 = vld [vmem:[%s257 + $0x8] sm:$0xf]
                  %262 = vst [vmem:[%s258 + $0x4] sm:$0xf] %v261
                $region71: #{tpu_custom_call.1} parent=58 // loop_footer
                  %s256 = sadd.s32 1, %s252
                $region72: #{tpu_custom_call.1} parent=58 // loop_footer_branch
                  %251 = sbr.rel target = $region68
                $region73: #{tpu_custom_call.1} parent=58 // loop_exit
                  _
              $region59: #{tpu_custom_call.1} parent=43 // pred_fallthru
                _
            $region44: #{tpu_custom_call.1} parent=39 // pred_fallthru
              _
            // Predicated region
            $region45: #{tpu_custom_call.1} parent=39 // pred_check
              _
            $region46: #{tpu_custom_call.1} parent=39 // pred_check_branch
              %226 = sbr.rel (0) target = $region48
            $region47: #{tpu_custom_call.1} parent=39 // pred_region
              loop: start=0, step=1, limit=1
              $region49: #{tpu_custom_call.1} parent=47 // loop_pre_header
                _
              $region50: #{tpu_custom_call.1} parent=47 // loop_header
                %s229 = sphi 0, %s233
                %p230 = scmp.ge.s32.totalorder %s229, 1
                %s234 = sphi %s220, %s220
                %s235 = sphi %s215, %s215
              $region51: #{tpu_custom_call.1} parent=47 // loop_header_branch
                %232 = sbr.rel (%p230) target = $region55
              $region52: #{tpu_custom_call.1} parent=47 // loop_body
                %v236 = vld [vmem:[%s234] sm:$0xf]
                %237 = vst [vmem:[%s235] sm:$0xf] %v236
                %v238 = vld [vmem:[%s234 + $0x8] sm:$0xf]
                %239 = vst [vmem:[%s235 + $0x4] sm:$0xf] %v238
              $region53: #{tpu_custom_call.1} parent=47 // loop_footer
                %s233 = sadd.s32 1, %s229
              $region54: #{tpu_custom_call.1} parent=47 // loop_footer_branch
                %228 = sbr.rel target = $region50
              $region55: #{tpu_custom_call.1} parent=47 // loop_exit
                _
            $region48: #{tpu_custom_call.1} parent=39 // pred_fallthru
              _
          $region40: #{tpu_custom_call.1} parent=35 // pred_fallthru
            _
          %263 = vnop
        $region36: #{tpu_custom_call.1} parent=31 // pred_fallthru
          _
      $region32: #{tpu_custom_call.1} parent=5 // pred_fallthru
        _
      %p264 = scmp.le.s32.totalorder 1, %s14
      %p265 = scmp.lt.s32.totalorder %s14, 3
      %p266 = pnand %p264, %p265
      %p267 = pneg %p266
      // Predicated region
      $region74: #{tpu_custom_call.1} parent=5 // pred_check
        _
      $region75: #{tpu_custom_call.1} parent=5 // pred_check_branch
        %269 = sbr.rel (%p266) target = $region77
      $region76: #{tpu_custom_call.1} parent=5 // pred_region
        %s270 = ssub.s32 %s14, 1
        %s271 = sand.u32 %s67, 1
        %s272 = sand.u32 %s67, 1
        %s273 = smul.addr %s272, 8
        %s274 = scalar_lea.vmem [#allocation2], %s273
        // Predicated region
        $region78: #{tpu_custom_call.1} parent=76 // pred_check
          %p275 = pneg %p80
        $region79: #{tpu_custom_call.1} parent=76 // pred_check_branch
          %277 = sbr.rel (%p275) target = $region81
        $region80: #{tpu_custom_call.1} parent=76 // pred_region
          _
        $region81: #{tpu_custom_call.1} parent=76 // pred_fallthru
          _
        %s278 = smul.u32 2, %s23
        %p279 = scmp.lt.s32.totalorder %s278, 1
        %s280 = scalar_select %p279, %s278, 1
        %s281 = smul.addr %s280, 4
        %s282 = smul.addr %s281, 8
        %s283 = scalar_lea.vmem %s0, %s282
        %p284 = pneg %p52
        %p285 = pneg %p49
        %s286 = sand.u32 %s67, 1
        %s287 = sand.u32 %s67, 1
        %s288 = smul.addr %s287, 8
        %s289 = scalar_lea.vmem [#allocation2], %s288
        %p290 = pneg %p80
        %p291 = pneg %p77
        %p292 = pneg %p101
        %p293 = pneg %p98
        %p294 = pneg %p122
        %p295 = pneg %p119
        %p296 = pneg %p143
        %p297 = pneg %p140
        %p298 = pneg %p171
        %p299 = pneg %p168
        %s300 = sand.u32 %s158, 1
        %s301 = scalar_lea.sflag [#allocation4], %s300
        %s302 = sand.u32 %s158, 1
        %s303 = smul.addr %s302, 4
        %s304 = scalar_lea.vmem [#allocation3], %s303
        %s305 = smul.u32 2, %s23
        %p306 = scmp.lt.s32.totalorder %s305, 1
        %s307 = scalar_select %p306, %s305, 1
        %s308 = smul.addr %s307, 4
        %s309 = smul.addr %s308, 8
        %s310 = scalar_lea.vmem %s0, %s309
        %s311 = smul.u32 2, %s23
        %s312 = smul.u32 2, %s23
        %s313 = smul.u32 2, %s23
        %v314 = vld [vmem:[%s2] sm:$0xff]
        %v315 = vld [vmem:[%s2 + $0x8] sm:$0xff]
        %v316 = vld [vmem:[%s2 + $0x10] sm:$0xff]
        %v317 = vld [vmem:[%s2 + $0x18] sm:$0xff]
        %v318 = vld [vmem:[%s3] sm:$0x3]
        %v319 = vld [vmem:[%s4] sm:$0x3]
        %v320 = vld [vmem:[%s274] sm:$0xf]
        %v321 = vld [vmem:[%s310] sm:$0xff]
        %v322 = vld [vmem:[%s310 + $0x8] sm:$0xff]
        %v323 = vld [vmem:[%s310 + $0x10] sm:$0xff]
        %v324 = vld [vmem:[%s310 + $0x18] sm:$0xff]
        %326 = vset.pattern.permute.xlu0 0
        %327 = vperm.xlu0 %326, %v321
        %v328 = vpop.permute.xlu0 %327
        %331 = vset.pattern.permute.xlu0 0
        %332 = vperm.xlu0 %331, %v322
        %v333 = vpop.permute.xlu0 %332
        %336 = vset.pattern.permute.xlu0 0
        %337 = vperm.xlu0 %336, %v323
        %v338 = vpop.permute.xlu0 %337
        %341 = vset.pattern.permute.xlu0 0
        %342 = vperm.xlu0 %341, %v324
        %v343 = vpop.permute.xlu0 %342
        %vm345 = vcmask 31744
        %v347 = vsel %vm345, %v314, 0
        %v350 = vsel %vm345, %v315, 0
        %v353 = vsel %vm345, %v316, 0
        %v356 = vsel %vm345, %v317, 0
        %vm358 = vcmask 1043456
        %v360 = vsel %vm358, %v320, 0
        %362 = vmatprep.subr.mxu0 0.0
        %363 = vmatpush1.msra.mxu0 %v360
        %364 = vmatprep.subr.mxu0 0.0
        %365 = vmatpush1.msra.mxu0 0.0
        %366 = vmatprep.subr.mxu0 0.0
        %367 = vmatpush1.msra.mxu0 0.0
        %368 = vmatprep.subr.mxu0 0.0
        %369 = vmatpush1.msra.mxu0 0.0
        %370 = vmatprep.subr.mxu0 0.0
        %371 = vmatpush1.msra.mxu0 0.0
        %372 = vmatprep.subr.mxu0 0.0
        %373 = vmatpush1.msra.mxu0 0.0
        %374 = vmatprep.subr.mxu0 0.0
        %375 = vmatpush1.msra.mxu0 0.0
        %376 = vmatprep.subr.mxu0 0.0
        %377 = vmatpush1.msra.mxu0 0.0
        %378 = vmatprep.subr.mxu0 0.0
        %379 = vmatpush1.msra.mxu0 0.0
        %380 = vmatprep.subr.mxu0 0.0
        %381 = vmatpush1.msra.mxu0 0.0
        %382 = vmatprep.subr.mxu0 0.0
        %383 = vmatpush1.msra.mxu0 0.0
        %384 = vmatprep.subr.mxu0 0.0
        %385 = vmatpush1.msra.mxu0 0.0
        %386 = vmatprep.subr.mxu0 0.0
        %387 = vmatpush1.msra.mxu0 0.0
        %388 = vmatprep.subr.mxu0 0.0
        %389 = vmatpush1.msra.mxu0 0.0
        %390 = vmatprep.subr.mxu0 0.0
        %391 = vmatpush1.msra.mxu0 0.0
        %392 = vmatprep.subr.mxu0 0.0
        %393 = vmatpush1.msra.mxu0 0.0
        %394 = vmatprep.subr.mxu0 0.0
        %395 = vmatpush1.msra.mxu0 0.0
        %396 = vmatprep.subr.mxu0 0.0
        %397 = vmatpush1.msra.mxu0 0.0
        %398 = vmatprep.subr.mxu0 0.0
        %399 = vmatpush1.msra.mxu0 0.0
        %400 = vmatprep.subr.mxu0 0.0
        %401 = vmatpush1.msra.mxu0 0.0
        %402 = vmatprep.subr.mxu0 0.0
        %403 = vmatpush1.msra.mxu0 0.0
        %404 = vmatprep.subr.mxu0 0.0
        %405 = vmatpush1.msra.mxu0 0.0
        %406 = vmatprep.subr.mxu0 0.0
        %407 = vmatpush1.msra.mxu0 0.0
        %408 = vmatprep.subr.mxu0 0.0
        %409 = vmatpush1.msra.mxu0 0.0
        %410 = vmatprep.subr.mxu0 0.0
        %411 = vmatpush1.msra.mxu0 0.0
        %412 = vmatprep.subr.mxu0 0.0
        %413 = vmatpush1.msra.mxu0 0.0
        %414 = vmatprep.subr.mxu0 0.0
        %415 = vmatpush1.msra.mxu0 0.0
        %416 = vmatprep.subr.mxu0 0.0
        %417 = vmatpush1.msra.mxu0 0.0
        %418 = vmatprep.subr.mxu0 0.0
        %419 = vmatpush1.msra.mxu0 0.0
        %420 = vmatprep.subr.mxu0 0.0
        %421 = vmatpush1.msra.mxu0 0.0
        %422 = vmatprep.subr.mxu0 0.0
        %423 = vmatpush1.msra.mxu0 0.0
        %424 = vmatprep.subr.mxu0 0.0
        %425 = vmatpush1.msra.mxu0 0.0
        %426 = vmatprep.mubr.f32.mxu0 0.0
        %427 = vmatmul.mubr.f32.gmra.mrb[0].mxu0 %v347
        %v428 = vpop.f32.mrb[0].mxu0
        %v429 = vadd.f32 %v328, %v428
        %v430 = vpop.f32.mrb[0].mxu0
        %431 = vmatprep.mubr.f32.mxu0 0.0
        %432 = vmatmul.mubr.f32.gmra.mrb[0].mxu0 %v350
        %v433 = vpop.f32.mrb[0].mxu0
        %v434 = vadd.f32 %v333, %v433
        %v435 = vpop.f32.mrb[0].mxu0
        %436 = vmatprep.mubr.f32.mxu0 0.0
        %437 = vmatmul.mubr.f32.gmra.mrb[0].mxu0 %v353
        %v438 = vpop.f32.mrb[0].mxu0
        %v439 = vadd.f32 %v338, %v438
        %v440 = vpop.f32.mrb[0].mxu0
        %441 = vmatprep.mubr.f32.mxu0 0.0
        %442 = vmatmul.mubr.f32.gmra.mrb[0].mxu0 %v356
        %v443 = vpop.f32.mrb[0].mxu0
        %v444 = vadd.f32 %v343, %v443
        %v445 = vpop.f32.mrb[0].mxu0
        %446 = vdwg.mxu0
        %v447 = vmax.f32 %v429, 0.0
        %v448 = vmax.f32 %v434, 0.0
        %v449 = vmax.f32 %v439, 0.0
        %v450 = vmax.f32 %v444, 0.0
        %452 = vset.pattern.permute.xlu0 0
        %453 = vperm.xlu0 %452, %v319
        %v454 = vpop.permute.xlu0 %453
        %vm456 = vcmask 261120
        %v458 = vsel %vm456, %v318, 0
        %460 = vmatprep.subr.mxu0 0.0
        %461 = vmatpush1.msra.mxu0 %v447
        %462 = vmatprep.subr.mxu0 0.0
        %463 = vmatpush1.msra.mxu0 %v448
        %464 = vmatprep.subr.mxu0 0.0
        %465 = vmatpush1.msra.mxu0 %v449
        %466 = vmatprep.subr.mxu0 0.0
        %467 = vmatpush1.msra.mxu0 %v450
        %468 = vmatprep.subr.mxu0 0.0
        %469 = vmatpush1.msra.mxu0 0.0
        %470 = vmatprep.subr.mxu0 0.0
        %471 = vmatpush1.msra.mxu0 0.0
        %472 = vmatprep.subr.mxu0 0.0
        %473 = vmatpush1.msra.mxu0 0.0
        %474 = vmatprep.subr.mxu0 0.0
        %475 = vmatpush1.msra.mxu0 0.0
        %476 = vmatprep.subr.mxu0 0.0
        %477 = vmatpush1.msra.mxu0 0.0
        %478 = vmatprep.subr.mxu0 0.0
        %479 = vmatpush1.msra.mxu0 0.0
        %480 = vmatprep.subr.mxu0 0.0
        %481 = vmatpush1.msra.mxu0 0.0
        %482 = vmatprep.subr.mxu0 0.0
        %483 = vmatpush1.msra.mxu0 0.0
        %484 = vmatprep.subr.mxu0 0.0
        %485 = vmatpush1.msra.mxu0 0.0
        %486 = vmatprep.subr.mxu0 0.0
        %487 = vmatpush1.msra.mxu0 0.0
        %488 = vmatprep.subr.mxu0 0.0
        %489 = vmatpush1.msra.mxu0 0.0
        %490 = vmatprep.subr.mxu0 0.0
        %491 = vmatpush1.msra.mxu0 0.0
        %492 = vmatprep.subr.mxu0 0.0
        %493 = vmatpush1.msra.mxu0 0.0
        %494 = vmatprep.subr.mxu0 0.0
        %495 = vmatpush1.msra.mxu0 0.0
        %496 = vmatprep.subr.mxu0 0.0
        %497 = vmatpush1.msra.mxu0 0.0
        %498 = vmatprep.subr.mxu0 0.0
        %499 = vmatpush1.msra.mxu0 0.0
        %500 = vmatprep.subr.mxu0 0.0
        %501 = vmatpush1.msra.mxu0 0.0
        %502 = vmatprep.subr.mxu0 0.0
        %503 = vmatpush1.msra.mxu0 0.0
        %504 = vmatprep.subr.mxu0 0.0
        %505 = vmatpush1.msra.mxu0 0.0
        %506 = vmatprep.subr.mxu0 0.0
        %507 = vmatpush1.msra.mxu0 0.0
        %508 = vmatprep.subr.mxu0 0.0
        %509 = vmatpush1.msra.mxu0 0.0
        %510 = vmatprep.subr.mxu0 0.0
        %511 = vmatpush1.msra.mxu0 0.0
        %512 = vmatprep.subr.mxu0 0.0
        %513 = vmatpush1.msra.mxu0 0.0
        %514 = vmatprep.subr.mxu0 0.0
        %515 = vmatpush1.msra.mxu0 0.0
        %516 = vmatprep.subr.mxu0 0.0
        %517 = vmatpush1.msra.mxu0 0.0
        %518 = vmatprep.subr.mxu0 0.0
        %519 = vmatpush1.msra.mxu0 0.0
        %520 = vmatprep.subr.mxu0 0.0
        %521 = vmatpush1.msra.mxu0 0.0
        %522 = vmatprep.subr.mxu0 0.0
        %523 = vmatpush1.msra.mxu0 0.0
        %524 = vmatprep.mubr.f32.mxu0 0.0
        %525 = vmatmul.mubr.f32.gmra.mrb[0].mxu0 %v458
        %v526 = vpop.f32.mrb[0].mxu0
        %v527 = vadd.f32 %v454, %v526
        %v528 = vpop.f32.mrb[0].mxu0
        %529 = vdwg.mxu0
        %530 = vst [vmem:[%s304] sm:$0x3] %v527
        %s531 = scalar_lea.vmem %s274, 4 [#allocation2]
        %v532 = vld [vmem:[%s531] sm:$0xf]
        %s533 = scalar_lea.vmem %s310, 32
        %v534 = vld [vmem:[%s533] sm:$0xff]
        %v535 = vld [vmem:[%s533 + $0x8] sm:$0xff]
        %v536 = vld [vmem:[%s533 + $0x10] sm:$0xff]
        %v537 = vld [vmem:[%s533 + $0x18] sm:$0xff]
        %539 = vset.pattern.permute.xlu0 0
        %540 = vperm.xlu0 %539, %v534
        %v541 = vpop.permute.xlu0 %540
        %544 = vset.pattern.permute.xlu0 0
        %545 = vperm.xlu0 %544, %v535
        %v546 = vpop.permute.xlu0 %545
        %549 = vset.pattern.permute.xlu0 0
        %550 = vperm.xlu0 %549, %v536
        %v551 = vpop.permute.xlu0 %550
        %554 = vset.pattern.permute.xlu0 0
        %555 = vperm.xlu0 %554, %v537
        %v556 = vpop.permute.xlu0 %555
        %v559 = vsel %vm358, %v532, 0
        %561 = vmatprep.subr.mxu0 0.0
        %562 = vmatpush1.msra.mxu0 %v559
        %563 = vmatprep.subr.mxu0 0.0
        %564 = vmatpush1.msra.mxu0 0.0
        %565 = vmatprep.subr.mxu0 0.0
        %566 = vmatpush1.msra.mxu0 0.0
        %567 = vmatprep.subr.mxu0 0.0
        %568 = vmatpush1.msra.mxu0 0.0
        %569 = vmatprep.subr.mxu0 0.0
        %570 = vmatpush1.msra.mxu0 0.0
        %571 = vmatprep.subr.mxu0 0.0
        %572 = vmatpush1.msra.mxu0 0.0
        %573 = vmatprep.subr.mxu0 0.0
        %574 = vmatpush1.msra.mxu0 0.0
        %575 = vmatprep.subr.mxu0 0.0
        %576 = vmatpush1.msra.mxu0 0.0
        %577 = vmatprep.subr.mxu0 0.0
        %578 = vmatpush1.msra.mxu0 0.0
        %579 = vmatprep.subr.mxu0 0.0
        %580 = vmatpush1.msra.mxu0 0.0
        %581 = vmatprep.subr.mxu0 0.0
        %582 = vmatpush1.msra.mxu0 0.0
        %583 = vmatprep.subr.mxu0 0.0
        %584 = vmatpush1.msra.mxu0 0.0
        %585 = vmatprep.subr.mxu0 0.0
        %586 = vmatpush1.msra.mxu0 0.0
        %587 = vmatprep.subr.mxu0 0.0
        %588 = vmatpush1.msra.mxu0 0.0
        %589 = vmatprep.subr.mxu0 0.0
        %590 = vmatpush1.msra.mxu0 0.0
        %591 = vmatprep.subr.mxu0 0.0
        %592 = vmatpush1.msra.mxu0 0.0
        %593 = vmatprep.subr.mxu0 0.0
        %594 = vmatpush1.msra.mxu0 0.0
        %595 = vmatprep.subr.mxu0 0.0
        %596 = vmatpush1.msra.mxu0 0.0
        %597 = vmatprep.subr.mxu0 0.0
        %598 = vmatpush1.msra.mxu0 0.0
        %599 = vmatprep.subr.mxu0 0.0
        %600 = vmatpush1.msra.mxu0 0.0
        %601 = vmatprep.subr.mxu0 0.0
        %602 = vmatpush1.msra.mxu0 0.0
        %603 = vmatprep.subr.mxu0 0.0
        %604 = vmatpush1.msra.mxu0 0.0
        %605 = vmatprep.subr.mxu0 0.0
        %606 = vmatpush1.msra.mxu0 0.0
        %607 = vmatprep.subr.mxu0 0.0
        %608 = vmatpush1.msra.mxu0 0.0
        %609 = vmatprep.subr.mxu0 0.0
        %610 = vmatpush1.msra.mxu0 0.0
        %611 = vmatprep.subr.mxu0 0.0
        %612 = vmatpush1.msra.mxu0 0.0
        %613 = vmatprep.subr.mxu0 0.0
        %614 = vmatpush1.msra.mxu0 0.0
        %615 = vmatprep.subr.mxu0 0.0
        %616 = vmatpush1.msra.mxu0 0.0
        %617 = vmatprep.subr.mxu0 0.0
        %618 = vmatpush1.msra.mxu0 0.0
        %619 = vmatprep.subr.mxu0 0.0
        %620 = vmatpush1.msra.mxu0 0.0
        %621 = vmatprep.subr.mxu0 0.0
        %622 = vmatpush1.msra.mxu0 0.0
        %623 = vmatprep.subr.mxu0 0.0
        %624 = vmatpush1.msra.mxu0 0.0
        %625 = vmatprep.mubr.f32.mxu0 0.0
        %626 = vmatmul.mubr.f32.gmra.mrb[0].mxu0 %v347
        %v627 = vpop.f32.mrb[0].mxu0
        %v628 = vadd.f32 %v541, %v627
        %v629 = vpop.f32.mrb[0].mxu0
        %630 = vmatprep.mubr.f32.mxu0 0.0
        %631 = vmatmul.mubr.f32.gmra.mrb[0].mxu0 %v350
        %v632 = vpop.f32.mrb[0].mxu0
        %v633 = vadd.f32 %v546, %v632
        %v634 = vpop.f32.mrb[0].mxu0
        %635 = vmatprep.mubr.f32.mxu0 0.0
        %636 = vmatmul.mubr.f32.gmra.mrb[0].mxu0 %v353
        %v637 = vpop.f32.mrb[0].mxu0
        %v638 = vadd.f32 %v551, %v637
        %v639 = vpop.f32.mrb[0].mxu0
        %640 = vmatprep.mubr.f32.mxu0 0.0
        %641 = vmatmul.mubr.f32.gmra.mrb[0].mxu0 %v356
        %v642 = vpop.f32.mrb[0].mxu0
        %v643 = vadd.f32 %v556, %v642
        %v644 = vpop.f32.mrb[0].mxu0
        %645 = vdwg.mxu0
        %v646 = vmax.f32 %v628, 0.0
        %v647 = vmax.f32 %v633, 0.0
        %v648 = vmax.f32 %v638, 0.0
        %v649 = vmax.f32 %v643, 0.0
        %650 = vmatprep.subr.mxu0 0.0
        %651 = vmatpush1.msra.mxu0 %v646
        %652 = vmatprep.subr.mxu0 0.0
        %653 = vmatpush1.msra.mxu0 %v647
        %654 = vmatprep.subr.mxu0 0.0
        %655 = vmatpush1.msra.mxu0 %v648
        %656 = vmatprep.subr.mxu0 0.0
        %657 = vmatpush1.msra.mxu0 %v649
        %658 = vmatprep.subr.mxu0 0.0
        %659 = vmatpush1.msra.mxu0 0.0
        %660 = vmatprep.subr.mxu0 0.0
        %661 = vmatpush1.msra.mxu0 0.0
        %662 = vmatprep.subr.mxu0 0.0
        %663 = vmatpush1.msra.mxu0 0.0
        %664 = vmatprep.subr.mxu0 0.0
        %665 = vmatpush1.msra.mxu0 0.0
        %666 = vmatprep.subr.mxu0 0.0
        %667 = vmatpush1.msra.mxu0 0.0
        %668 = vmatprep.subr.mxu0 0.0
        %669 = vmatpush1.msra.mxu0 0.0
        %670 = vmatprep.subr.mxu0 0.0
        %671 = vmatpush1.msra.mxu0 0.0
        %672 = vmatprep.subr.mxu0 0.0
        %673 = vmatpush1.msra.mxu0 0.0
        %674 = vmatprep.subr.mxu0 0.0
        %675 = vmatpush1.msra.mxu0 0.0
        %676 = vmatprep.subr.mxu0 0.0
        %677 = vmatpush1.msra.mxu0 0.0
        %678 = vmatprep.subr.mxu0 0.0
        %679 = vmatpush1.msra.mxu0 0.0
        %680 = vmatprep.subr.mxu0 0.0
        %681 = vmatpush1.msra.mxu0 0.0
        %682 = vmatprep.subr.mxu0 0.0
        %683 = vmatpush1.msra.mxu0 0.0
        %684 = vmatprep.subr.mxu0 0.0
        %685 = vmatpush1.msra.mxu0 0.0
        %686 = vmatprep.subr.mxu0 0.0
        %687 = vmatpush1.msra.mxu0 0.0
        %688 = vmatprep.subr.mxu0 0.0
        %689 = vmatpush1.msra.mxu0 0.0
        %690 = vmatprep.subr.mxu0 0.0
        %691 = vmatpush1.msra.mxu0 0.0
        %692 = vmatprep.subr.mxu0 0.0
        %693 = vmatpush1.msra.mxu0 0.0
        %694 = vmatprep.subr.mxu0 0.0
        %695 = vmatpush1.msra.mxu0 0.0
        %696 = vmatprep.subr.mxu0 0.0
        %697 = vmatpush1.msra.mxu0 0.0
        %698 = vmatprep.subr.mxu0 0.0
        %699 = vmatpush1.msra.mxu0 0.0
        %700 = vmatprep.subr.mxu0 0.0
        %701 = vmatpush1.msra.mxu0 0.0
        %702 = vmatprep.subr.mxu0 0.0
        %703 = vmatpush1.msra.mxu0 0.0
        %704 = vmatprep.subr.mxu0 0.0
        %705 = vmatpush1.msra.mxu0 0.0
        %706 = vmatprep.subr.mxu0 0.0
        %707 = vmatpush1.msra.mxu0 0.0
        %708 = vmatprep.subr.mxu0 0.0
        %709 = vmatpush1.msra.mxu0 0.0
        %710 = vmatprep.subr.mxu0 0.0
        %711 = vmatpush1.msra.mxu0 0.0
        %712 = vmatprep.subr.mxu0 0.0
        %713 = vmatpush1.msra.mxu0 0.0
        %714 = vmatprep.mubr.f32.mxu0 0.0
        %715 = vmatmul.mubr.f32.gmra.mrb[0].mxu0 %v458
        %v716 = vpop.f32.mrb[0].mxu0
        %v717 = vadd.f32 %v454, %v716
        %v718 = vpop.f32.mrb[0].mxu0
        %719 = vdwg.mxu0
        %s720 = scalar_lea.vmem %s304, 2 [#allocation3]
        %721 = vst [vmem:[%s720] sm:$0x3] %v717
        %s722 = sand.u32 %s158, 1
        %s723 = scalar_lea.sflag [#allocation4], %s722
        %s724 = sand.u32 %s158, 1
        %s725 = smul.addr %s724, 4
        %s726 = scalar_lea.vmem [#allocation3], %s725
        // Predicated region
        $region82: #{tpu_custom_call.1} parent=76 // pred_check
          %p727 = pneg %p168
        $region83: #{tpu_custom_call.1} parent=76 // pred_check_branch
          %729 = sbr.rel (%p727) target = $region85
        $region84: #{tpu_custom_call.1} parent=76 // pred_region
          %s730 = smul.u32 2, %s23
          %s732 = ssub.s32 64, 64
          %733 = vsyncadd %s723, %s732
          %s734 = smul.addr %s730, 2
          %s735 = sadd.s32 %s24, %s734
          %s736 = smul.addr %s735, 32
          %s737 = scalar_lea.hbm %s5, %s736
          %s738 = sshll.u32 %s726, 4
          %s739 = int_to_ptr.vmem [resolvable:$true] %s738
          %744 = dma.vmem_to_hbm [thread:$0]  %s739, 64, %s737, %s723, 32, 64, 2
        $region85: #{tpu_custom_call.1} parent=76 // pred_fallthru
          _
      $region77: #{tpu_custom_call.1} parent=5 // pred_fallthru
        _
      %p745 = scmp.le.s32.totalorder 2, %s14
      // Predicated region
      $region86: #{tpu_custom_call.1} parent=5 // pred_check
        %p746 = pneg %p745
      $region87: #{tpu_custom_call.1} parent=5 // pred_check_branch
        %748 = sbr.rel (%p746) target = $region89
      $region88: #{tpu_custom_call.1} parent=5 // pred_region
        %s749 = ssub.s32 %s14, 2
        // Predicated region
        $region90: #{tpu_custom_call.1} parent=88 // pred_check
          %p750 = pneg %p174
        $region91: #{tpu_custom_call.1} parent=88 // pred_check_branch
          %752 = sbr.rel (%p750) target = $region93
        $region92: #{tpu_custom_call.1} parent=88 // pred_region
          %s753 = sand.u32 %s159, 1
          %s754 = scalar_lea.sflag [#allocation4], %s753
          %s755 = sand.u32 %s159, 1
          %s756 = smul.addr %s755, 4
          %s757 = scalar_lea.vmem [#allocation3], %s756
          %758 = dma.done %s754, 64
        $region93: #{tpu_custom_call.1} parent=88 // pred_fallthru
          _
      $region89: #{tpu_custom_call.1} parent=5 // pred_fallthru
        _
    $region6: #{tpu_custom_call.1} parent=1 // loop_footer
      %s18 = sadd.s32 1, %s14
    $region7: #{tpu_custom_call.1} parent=1 // loop_footer_branch
      %13 = sbr.rel target = $region3
    $region8: #{tpu_custom_call.1} parent=1 // loop_exit
      _
    %759 = vsyncpa [#allocation4], 1
    %s760 = scalar_lea.sflag [#allocation4], 1
    %761 = vsyncpa %s760, 1

</llo_original>
